<compile_context>
chip_gen: v7x
topology: tpu7x:2x2x1
jax: 0.10.0
libtpu: 0.0.40
codegen_flags: <defaults>
</compile_context>

<pallas_src>
import functools

import jax
import jax.numpy as jnp
from jax.experimental import pallas as pl
from jax.experimental.pallas import tpu as pltpu


def _round_up(n, m):
    return ((n + m - 1) // m) * m


def _classy_nn_kernel(x_ref, w1_ref, b1_ref, w2_ref, b2_ref, o_ref):
    # fc1: (TB, In) @ (In, H) on the MXU, f32 accumulate; bias + ReLU on the VPU.
    x = x_ref[...].astype(jnp.bfloat16)            # bf16 cast in-kernel (MXU-native)
    h = jnp.dot(x, w1_ref[...], preferred_element_type=jnp.float32)
    h = jnp.maximum(h + b1_ref[...], 0.0)
    # fc2: (TB, H) @ (H, Out), f32 accumulate, + bias.
    z = jnp.dot(h.astype(jnp.bfloat16), w2_ref[...],
                preferred_element_type=jnp.float32)
    z = z + b2_ref[...]
    # Softmax over dim=1 (class axis == last axis of the 2-D block).
    z_max = jnp.max(z, axis=-1, keepdims=True)
    e = jnp.exp(z - z_max)
    denom = jnp.sum(e, axis=-1, keepdims=True)
    o_ref[...] = (e * pl.reciprocal(denom)).astype(o_ref.dtype)   # exact recip


def prepare_params(w1, b1, w2, b2):
    """One-time prep: weights (in, out) in bf16, biases as (1, out) f32 rows.

    Weights are stored as (in_features, out_features), so the kernel computes
    x @ W + b, equivalent to PyTorch's x @ W.T with W of shape (out, in).
    """
    return (w1.astype(jnp.bfloat16),
            b1.astype(jnp.float32).reshape(1, -1),
            w2.astype(jnp.bfloat16),
            b2.astype(jnp.float32).reshape(1, -1))


@functools.lru_cache(maxsize=None)
def _hw_budgets():
    """Generation-aware VMEM limit and max batch tile (queried once)."""
    vmem_cap = 64 * 1024 * 1024                     # conservative fallback (v7x per-TC)
    try:
        info = pltpu.get_tpu_info()
        vmem_cap = int(getattr(info, "vmem_capacity_bytes", vmem_cap))
    except Exception:
        pass
    # ~54 MiB on v7x (64 MiB VMEM), ~108 MiB on v5e/v6e (128 MiB VMEM).
    vmem_limit = min(int(vmem_cap * 0.85), 112 * 1024 * 1024)
    tb_max = 1024 if vmem_cap >= 96 * 1024 * 1024 else 512
    return vmem_limit, tb_max


def _choose_tb(B, In, H, Out, vmem_limit, tb_max):
    """Batch tile: multiple of 16 (128 when multi-tile), sized against VMEM,
    and chosen so round_up(B, TB) does not append a nearly-empty tile."""
    # Rough per-row VMEM cost: double-buffered f32 x/out streams plus the f32
    # hidden/logit intermediates of the live tile.
    per_row = 2 * 4 * In + 2 * 4 * Out + 4 * H + 4 * Out
    weight_bytes = 2 * In * H + 2 * H * Out + 4 * (H + Out)      # single-buffered
    budget = int(vmem_limit * 0.6) - weight_bytes
    cap = max(16, (budget // max(per_row, 1)) // 16 * 16)
    tb_max = max(16, min(tb_max, cap))
    if B <= tb_max:
        return _round_up(B, 16)
    n_tiles = -(-B // tb_max)                       # ceil
    tb = _round_up(-(-B // n_tiles), 128)
    return min(tb, _round_up(tb_max, 16))


@functools.partial(jax.jit, static_argnames=("tb", "vmem_limit"))
def _forward_pallas(x_pad, w1, b1, w2, b2, *, tb, vmem_limit):
    B_pad, In = x_pad.shape
    H = w1.shape[1]
    Out = w2.shape[1]

    def resident(shape):
        # Constant index_map -> fetched once and held; Buffered(1) avoids
        # wasting a second, never-used VMEM buffer on each resident operand.
        return pl.BlockSpec(shape, lambda i: (0, 0), pipeline_mode=pl.Buffered(1))

    return pl.pallas_call(
        _classy_nn_kernel,
        out_shape=jax.ShapeDtypeStruct((B_pad, Out), jnp.float32),
        grid_spec=pltpu.PrefetchScalarGridSpec(
            num_scalar_prefetch=0,
            grid=(B_pad // tb,),
            in_specs=[
                pl.BlockSpec((tb, In), lambda i: (i, 0)),   # x tile streams (f32)
                resident((In, H)),                          # w1 (bf16)
                resident((1, H)),                           # b1 (f32)
                resident((H, Out)),                         # w2 (bf16)
                resident((1, Out)),                         # b2 (f32)
            ],
            out_specs=pl.BlockSpec((tb, Out), lambda i: (i, 0)),
        ),
        compiler_params=pltpu.CompilerParams(
            dimension_semantics=("parallel",),   # batch tiles split over TCs on v7x
            vmem_limit_bytes=vmem_limit,
        ),
    )(x_pad, w1, b1, w2, b2)


def classy_nn_forward(x, w1, b1, w2, b2):
    """x: (B, In) f32; params from prepare_params(). Returns (B, Out) f32 softmax."""
    B, In = x.shape
    H = w1.shape[1]
    Out = w2.shape[1]
    vmem_limit, tb_max = _hw_budgets()
    tb = _choose_tb(B, In, H, Out, vmem_limit, tb_max)
    B_pad = _round_up(B, tb)
    # Batch-only pad (no feature padding); skipped entirely when B is aligned.
    x_pad = x if B_pad == B else jnp.pad(x, ((0, B_pad - B), (0, 0)))
    out = _forward_pallas(x_pad, w1, b1, w2, b2, tb=tb, vmem_limit=vmem_limit)
    return out[:B]


def init_params(key, input_size, hidden_size, output_size):
    """Deterministic init mimicking torch.nn.Linear (uniform +/- 1/sqrt(fan_in))."""
    k1, k2, k3, k4 = jax.random.split(key, 4)
    bound1 = 1.0 / jnp.sqrt(jnp.float32(input_size))
    bound2 = 1.0 / jnp.sqrt(jnp.float32(hidden_size))
    w1 = jax.random.uniform(k1, (input_size, hidden_size), jnp.float32,
                            minval=-bound1, maxval=bound1)
    b1 = jax.random.uniform(k2, (hidden_size,), jnp.float32,
                            minval=-bound1, maxval=bound1)
    w2 = jax.random.uniform(k3, (hidden_size, output_size), jnp.float32,
                            minval=-bound2, maxval=bound2)
    b2 = jax.random.uniform(k4, (output_size,), jnp.float32,
                            minval=-bound2, maxval=bound2)
    return w1, b1, w2, b2


def reference_forward(x, w1, b1, w2, b2):
    h = jnp.maximum(x @ w1 + b1, 0.0)
    z = h @ w2 + b2
    return jax.nn.softmax(z, axis=1)


if __name__ == "__main__":
    # Small shapes consistent with the module: x is (batch, input_size).
    batch, input_size, hidden_size, output_size = 64, 16, 32, 8

    key = jax.random.PRNGKey(0)
    kx, kp = jax.random.split(key)
    x = jax.random.normal(kx, (batch, input_size), jnp.float32)
    w1, b1, w2, b2 = init_params(kp, input_size, hidden_size, output_size)

    w1_p, b1_p, w2_p, b2_p = prepare_params(w1, b1, w2, b2)

    out = classy_nn_forward(x, w1_p, b1_p, w2_p, b2_p)
    out = jax.block_until_ready(out)

    ref = reference_forward(x, w1, b1, w2, b2)
    assert out.shape == (batch, output_size)
    # bf16 MXU inputs -> relaxed (but still tight) tolerance vs the f32 reference.
    assert jnp.allclose(out, ref, atol=2e-2, rtol=2e-2)
    # exact reciprocal -> softmax rows sum to 1 at f32 precision.
    assert jnp.allclose(jnp.sum(out, axis=1), jnp.ones((batch,)), atol=2e-3)

    print("KERNEL_OK")
</pallas_src>

<mosaic_0001>
module attributes {stable_mosaic.version = 11 : i64} {
  func.func @_classy_nn_kernel(%arg0: i32, %arg1: memref<64x16xf32, #tpu.memory_space<vmem>>, %arg2: memref<16x32xbf16, #tpu.memory_space<vmem>>, %arg3: memref<1x32xf32, #tpu.memory_space<vmem>>, %arg4: memref<32x8xbf16, #tpu.memory_space<vmem>>, %arg5: memref<1x8xf32, #tpu.memory_space<vmem>>, %arg6: memref<64x8xf32, #tpu.memory_space<vmem>>) attributes {dimension_semantics = [#tpu.dimension_semantics<parallel>], iteration_bounds = array<i64: 1>, scalar_prefetch = 0 : i64, scratch_operands = 0 : i64, tpu.core_type = #tpu.core_type<tc>, window_params = [{transform_indices = @transform_0, window_bounds = array<i64: 64, 16>}, {pipeline_mode = #tpu.pipeline_mode<synchronous>, transform_indices = @transform_1, window_bounds = array<i64: 16, 32>}, {pipeline_mode = #tpu.pipeline_mode<synchronous>, transform_indices = @transform_2, window_bounds = array<i64: 1, 32>}, {pipeline_mode = #tpu.pipeline_mode<synchronous>, transform_indices = @transform_3, window_bounds = array<i64: 32, 8>}, {pipeline_mode = #tpu.pipeline_mode<synchronous>, transform_indices = @transform_4, window_bounds = array<i64: 1, 8>}, {transform_indices = @transform_5, window_bounds = array<i64: 64, 8>}]} {
    %c0 = arith.constant 0 : index
    %c0_0 = arith.constant 0 : index
    %0 = vector.load %arg1[%c0, %c0_0] : memref<64x16xf32, #tpu.memory_space<vmem>>, vector<64x16xf32>
    %1 = arith.truncf %0 : vector<64x16xf32> to vector<64x16xbf16>
    %c0_1 = arith.constant 0 : index
    %c0_2 = arith.constant 0 : index
    %2 = vector.load %arg2[%c0_1, %c0_2] : memref<16x32xbf16, #tpu.memory_space<vmem>>, vector<16x32xbf16>
    %cst = arith.constant dense<0.000000e+00> : vector<64x32xf32>
    %3 = tpu.matmul %1, %2, %cst {dimension_numbers = #tpu.dot_dimension_numbers<[1], [0], [0], [1], [0, 0, 1, 1], [], []>} : vector<64x16xbf16>, vector<16x32xbf16>, vector<64x32xf32> -> vector<64x32xf32>
    %c0_3 = arith.constant 0 : index
    %c0_4 = arith.constant 0 : index
    %4 = vector.load %arg3[%c0_3, %c0_4] : memref<1x32xf32, #tpu.memory_space<vmem>>, vector<1x32xf32>
    %5 = vector.broadcast %4 : vector<1x32xf32> to vector<64x32xf32>
    %6 = arith.addf %3, %5 : vector<64x32xf32>
    %cst_5 = arith.constant 0.000000e+00 : f32
    %7 = vector.broadcast %cst_5 : f32 to vector<64x32xf32>
    %8 = arith.maximumf %6, %7 : vector<64x32xf32>
    %9 = arith.truncf %8 : vector<64x32xf32> to vector<64x32xbf16>
    %c0_6 = arith.constant 0 : index
    %c0_7 = arith.constant 0 : index
    %10 = vector.load %arg4[%c0_6, %c0_7] : memref<32x8xbf16, #tpu.memory_space<vmem>>, vector<32x8xbf16>
    %cst_8 = arith.constant dense<0.000000e+00> : vector<64x8xf32>
    %11 = tpu.matmul %9, %10, %cst_8 {dimension_numbers = #tpu.dot_dimension_numbers<[1], [0], [0], [1], [0, 0, 1, 1], [], []>} : vector<64x32xbf16>, vector<32x8xbf16>, vector<64x8xf32> -> vector<64x8xf32>
    %c0_9 = arith.constant 0 : index
    %c0_10 = arith.constant 0 : index
    %12 = vector.load %arg5[%c0_9, %c0_10] : memref<1x8xf32, #tpu.memory_space<vmem>>, vector<1x8xf32>
    %13 = vector.broadcast %12 : vector<1x8xf32> to vector<64x8xf32>
    %14 = arith.addf %11, %13 : vector<64x8xf32>
    %cst_11 = arith.constant dense<0xFF800000> : vector<64xf32>
    %15 = vector.multi_reduction <maximumf>, %14, %cst_11 [1] : vector<64x8xf32> to vector<64xf32>
    %16 = vector.shape_cast %15 : vector<64xf32> to vector<64x1xf32>
    %17 = vector.broadcast %16 : vector<64x1xf32> to vector<64x8xf32>
    %18 = arith.subf %14, %17 : vector<64x8xf32>
    %19 = math.exp %18 : vector<64x8xf32>
    %cst_12 = arith.constant dense<0.000000e+00> : vector<64xf32>
    %20 = vector.multi_reduction <add>, %19, %cst_12 [1] : vector<64x8xf32> to vector<64xf32>
    %21 = vector.shape_cast %20 : vector<64xf32> to vector<64x1xf32>
    %22 = tpu.reciprocal %21 : vector<64x1xf32> -> vector<64x1xf32>
    %23 = vector.broadcast %22 : vector<64x1xf32> to vector<64x8xf32>
    %24 = arith.mulf %19, %23 : vector<64x8xf32>
    %c0_13 = arith.constant 0 : index
    %c0_14 = arith.constant 0 : index
    %25 = vector.load %arg6[%c0_13, %c0_14] : memref<64x8xf32, #tpu.memory_space<vmem>>, vector<64x8xf32>
    tpu.vector_store %arg6[%c0_13, %c0_14], %24 {strides = array<i32>} : memref<64x8xf32, #tpu.memory_space<vmem>>, vector<64x8xf32>,
    return
  }
  func.func @transform_0(%arg0: i32) -> (i32, i32) {
    %c0_i32 = arith.constant 0 : i32
    %c0_i32_0 = arith.constant 0 : i32
    return %arg0, %c0_i32 : i32, i32
  }
  func.func @transform_1(%arg0: i32) -> (i32, i32) {
    %c0_i32 = arith.constant 0 : i32
    %c0_i32_0 = arith.constant 0 : i32
    %c0_i32_1 = arith.constant 0 : i32
    return %c0_i32, %c0_i32_0 : i32, i32
  }
  func.func @transform_2(%arg0: i32) -> (i32, i32) {
    %c0_i32 = arith.constant 0 : i32
    %c0_i32_0 = arith.constant 0 : i32
    %c0_i32_1 = arith.constant 0 : i32
    return %c0_i32, %c0_i32_0 : i32, i32
  }
  func.func @transform_3(%arg0: i32) -> (i32, i32) {
    %c0_i32 = arith.constant 0 : i32
    %c0_i32_0 = arith.constant 0 : i32
    %c0_i32_1 = arith.constant 0 : i32
    return %c0_i32, %c0_i32_0 : i32, i32
  }
  func.func @transform_4(%arg0: i32) -> (i32, i32) {
    %c0_i32 = arith.constant 0 : i32
    %c0_i32_0 = arith.constant 0 : i32
    %c0_i32_1 = arith.constant 0 : i32
    return %c0_i32, %c0_i32_0 : i32, i32
  }
  func.func @transform_5(%arg0: i32) -> (i32, i32) {
    %c0_i32 = arith.constant 0 : i32
    %c0_i32_0 = arith.constant 0 : i32
    return %arg0, %c0_i32 : i32, i32
  }
}

</mosaic_0001>

<llo_original>
// kernel: _forward_pallas.1
$region0: #{_forward_pallas.1}
  #allocation0 [shape = 'u32[]', space=smem, size = 0x4, offset = 0x4, fixed_abs, tag = 'smem constant byte address 0x4 - core index']
  #allocation1 [shape = 'u32[144,128]{1,0:T(1,128)}', space=vmem, size = 0x12000, scoped, tag = 'internal scratch']
  %s0 = inlined_call_operand.vmem [shape: f32[64,16], index: 0, kind: input, shape index: {}]
  %s1 = inlined_call_operand.vmem [shape: bf16[16,32], index: 1, kind: input, shape index: {}]
  %s2 = inlined_call_operand.vmem [shape: f32[1,32], index: 2, kind: input, shape index: {}]
  %s3 = inlined_call_operand.vmem [shape: bf16[32,8], index: 3, kind: input, shape index: {}]
  %s4 = inlined_call_operand.vmem [shape: f32[1,8], index: 4, kind: input, shape index: {}]
  %s5 = inlined_call_operand.vmem [shape: f32[64,8], index: 5, kind: output, shape index: {}]
  %s6 = sld [smem:[#allocation0]]
  $region30: #{_forward_pallas.1} parent=0
    _
  %s8 = ssub.s32 1, %s6
  %s9 = scalar_select 0, %s8, %s6
  // Predicated region
  $region2: #{_forward_pallas.1} parent=0 // pred_check
    _
  $region3: #{_forward_pallas.1} parent=0 // pred_check_branch
    %11 = sbr.rel (0) target = $region5
  $region4: #{_forward_pallas.1} parent=0 // pred_region
    _
  $region5: #{_forward_pallas.1} parent=0 // pred_fallthru
    _
  // Predicated region
  $region6: #{_forward_pallas.1} parent=0 // pred_check
    _
  $region7: #{_forward_pallas.1} parent=0 // pred_check_branch
    %13 = sbr.rel (0) target = $region9
  $region8: #{_forward_pallas.1} parent=0 // pred_region
    _
  $region9: #{_forward_pallas.1} parent=0 // pred_fallthru
    _
  // Predicated region
  $region10: #{_forward_pallas.1} parent=0 // pred_check
    _
  $region11: #{_forward_pallas.1} parent=0 // pred_check_branch
    %15 = sbr.rel (0) target = $region13
  $region12: #{_forward_pallas.1} parent=0 // pred_region
    _
  $region13: #{_forward_pallas.1} parent=0 // pred_fallthru
    _
  // Predicated region
  $region14: #{_forward_pallas.1} parent=0 // pred_check
    _
  $region15: #{_forward_pallas.1} parent=0 // pred_check_branch
    %17 = sbr.rel (0) target = $region17
  $region16: #{_forward_pallas.1} parent=0 // pred_region
    _
  $region17: #{_forward_pallas.1} parent=0 // pred_fallthru
    _
  // Predicated region
  $region18: #{_forward_pallas.1} parent=0 // pred_check
    _
  $region19: #{_forward_pallas.1} parent=0 // pred_check_branch
    %19 = sbr.rel (0) target = $region21
  $region20: #{_forward_pallas.1} parent=0 // pred_region
    _
  $region21: #{_forward_pallas.1} parent=0 // pred_fallthru
    _
  %v21 = vld [vmem:[%s0] sm:$0xff]
  %v22 = vld [vmem:[%s0 + $0x8] sm:$0xff]
  %v23 = vld [vmem:[%s0 + $0x10] sm:$0xff]
  %v24 = vld [vmem:[%s0 + $0x18] sm:$0xff]
  %v25 = vld [vmem:[%s0 + $0x20] sm:$0xff]
  %v26 = vld [vmem:[%s0 + $0x28] sm:$0xff]
  %v27 = vld [vmem:[%s0 + $0x30] sm:$0xff]
  %v28 = vld [vmem:[%s0 + $0x38] sm:$0xff]
  %v29 = vpack.c.bf16 %v22, %v21
  %v30 = vpack.c.bf16 %v24, %v23
  %v31 = vpack.c.bf16 %v26, %v25
  %v32 = vpack.c.bf16 %v28, %v27
  %v33 = vld [vmem:[%s1] sm:$0xf]
  %v34 = vld [vmem:[%s1 + $0x4] sm:$0xf]
  %v35 = vld [vmem:[%s2] sm:$0x1]
  %v37 = vlaneseq
  %v38 = vshrl.u32 %v37, 7
  %v39 = vsub.s32 0, %v38
  %v40 = vrot.slane %v35, %v39
  %v44 = vunpack.c.l.b16 %v33
  %v45 = vunpack.c.l.b16 %v34
  %v46 = vpack.c.b16 %v45, %v44
  %vm48 = vcmask 130048
  %v50 = vsel %vm48, %v29, 0
  %v53 = vsel %vm48, %v30, 0
  %v56 = vsel %vm48, %v31, 0
  %v59 = vsel %vm48, %v32, 0
  %61 = vmatprep.subr.bf16.mxu0 0
  %62 = vmatpush1.bf16.msra.mxu0 %v46
  %63 = vmatprep.subr.bf16.mxu0 0
  %64 = vmatpush1.bf16.msra.mxu0 0
  %65 = vmatprep.subr.bf16.mxu0 0
  %66 = vmatpush1.bf16.msra.mxu0 0
  %67 = vmatprep.subr.bf16.mxu0 0
  %68 = vmatpush1.bf16.msra.mxu0 0
  %69 = vmatprep.subr.bf16.mxu0 0
  %70 = vmatpush1.bf16.msra.mxu0 0
  %71 = vmatprep.subr.bf16.mxu0 0
  %72 = vmatpush1.bf16.msra.mxu0 0
  %73 = vmatprep.subr.bf16.mxu0 0
  %74 = vmatpush1.bf16.msra.mxu0 0
  %75 = vmatprep.subr.bf16.mxu0 0
  %76 = vmatpush1.bf16.msra.mxu0 0
  %77 = vmatprep.subr.bf16.mxu0 0
  %78 = vmatpush1.bf16.msra.mxu0 0
  %79 = vmatprep.subr.bf16.mxu0 0
  %80 = vmatpush1.bf16.msra.mxu0 0
  %81 = vmatprep.subr.bf16.mxu0 0
  %82 = vmatpush1.bf16.msra.mxu0 0
  %83 = vmatprep.subr.bf16.mxu0 0
  %84 = vmatpush1.bf16.msra.mxu0 0
  %85 = vmatprep.subr.bf16.mxu0 0
  %86 = vmatpush1.bf16.msra.mxu0 0
  %87 = vmatprep.subr.bf16.mxu0 0
  %88 = vmatpush1.bf16.msra.mxu0 0
  %89 = vmatprep.subr.bf16.mxu0 0
  %90 = vmatpush1.bf16.msra.mxu0 0
  %91 = vmatprep.subr.bf16.mxu0 0
  %92 = vmatpush1.bf16.msra.mxu0 0
  %93 = vmatprep.mubr.bf16.mxu0 0
  %94 = vmatmul.mubr.bf16.gmra.mrb[0].mxu0 %v50
  %v95 = vpop.f32.mrb[0].mxu0
  %v96 = vadd.f32 %v40, %v95
  %v97 = vpop.f32.mrb[0].mxu0
  %v98 = vpop.f32.mrb[0].mxu0
  %v99 = vadd.f32 %v40, %v98
  %v100 = vpop.f32.mrb[0].mxu0
  %101 = vmatprep.mubr.bf16.mxu0 0
  %102 = vmatmul.mubr.bf16.gmra.mrb[0].mxu0 %v53
  %v103 = vpop.f32.mrb[0].mxu0
  %v104 = vadd.f32 %v40, %v103
  %v105 = vpop.f32.mrb[0].mxu0
  %v106 = vpop.f32.mrb[0].mxu0
  %v107 = vadd.f32 %v40, %v106
  %v108 = vpop.f32.mrb[0].mxu0
  %109 = vmatprep.mubr.bf16.mxu0 0
  %110 = vmatmul.mubr.bf16.gmra.mrb[0].mxu0 %v56
  %v111 = vpop.f32.mrb[0].mxu0
  %v112 = vadd.f32 %v40, %v111
  %v113 = vpop.f32.mrb[0].mxu0
  %v114 = vpop.f32.mrb[0].mxu0
  %v115 = vadd.f32 %v40, %v114
  %v116 = vpop.f32.mrb[0].mxu0
  %117 = vmatprep.mubr.bf16.mxu0 0
  %118 = vmatmul.mubr.bf16.gmra.mrb[0].mxu0 %v59
  %v119 = vpop.f32.mrb[0].mxu0
  %v120 = vadd.f32 %v40, %v119
  %v121 = vpop.f32.mrb[0].mxu0
  %v122 = vpop.f32.mrb[0].mxu0
  %v123 = vadd.f32 %v40, %v122
  %v124 = vpop.f32.mrb[0].mxu0
  %125 = vdwg.mxu0
  %v126 = vmax.f32 %v96, 0.0
  %v127 = vmax.f32 %v99, 0.0
  %v128 = vmax.f32 %v104, 0.0
  %v129 = vmax.f32 %v107, 0.0
  %v130 = vmax.f32 %v112, 0.0
  %v131 = vmax.f32 %v115, 0.0
  %v132 = vmax.f32 %v120, 0.0
  %v133 = vmax.f32 %v123, 0.0
  %v134 = vpack.c.bf16 %v127, %v126
  %v135 = vpack.c.bf16 %v129, %v128
  %v136 = vpack.c.bf16 %v131, %v130
  %v137 = vpack.c.bf16 %v133, %v132
  %v138 = vld [vmem:[%s3] sm:$0xf]
  %v139 = vld [vmem:[%s3 + $0x4] sm:$0xf]
  %v140 = vld [vmem:[%s3 + $0x8] sm:$0xf]
  %v141 = vld [vmem:[%s3 + $0xc] sm:$0xf]
  %v142 = vld [vmem:[%s4] sm:$0x1]
  %v144 = vlaneseq
  %v145 = vshrl.u32 %v144, 7
  %v146 = vsub.s32 0, %v145
  %v147 = vrot.slane %v142, %v146
  %v153 = vunpack.c.l.b16 %v138
  %v154 = vunpack.c.l.b16 %v139
  %v155 = vunpack.c.l.b16 %v140
  %v156 = vunpack.c.l.b16 %v141
  %v157 = vpack.c.b16 %v154, %v153
  %v158 = vpack.c.b16 %v156, %v155
  %vm161 = vcmask 261120
  %v163 = vsel %vm161, %v134, 0
  %v166 = vsel %vm161, %v135, 0
  %v169 = vsel %vm161, %v136, 0
  %v172 = vsel %vm161, %v137, 0
  %174 = vmatprep.subr.bf16.mxu0 0
  %175 = vmatpush1.bf16.msra.mxu0 %v157
  %176 = vmatprep.subr.bf16.mxu0 0
  %177 = vmatpush1.bf16.msra.mxu0 %v158
  %178 = vmatprep.subr.bf16.mxu0 0
  %179 = vmatpush1.bf16.msra.mxu0 0
  %180 = vmatprep.subr.bf16.mxu0 0
  %181 = vmatpush1.bf16.msra.mxu0 0
  %182 = vmatprep.subr.bf16.mxu0 0
  %183 = vmatpush1.bf16.msra.mxu0 0
  %184 = vmatprep.subr.bf16.mxu0 0
  %185 = vmatpush1.bf16.msra.mxu0 0
  %186 = vmatprep.subr.bf16.mxu0 0
  %187 = vmatpush1.bf16.msra.mxu0 0
  %188 = vmatprep.subr.bf16.mxu0 0
  %189 = vmatpush1.bf16.msra.mxu0 0
  %190 = vmatprep.subr.bf16.mxu0 0
  %191 = vmatpush1.bf16.msra.mxu0 0
  %192 = vmatprep.subr.bf16.mxu0 0
  %193 = vmatpush1.bf16.msra.mxu0 0
  %194 = vmatprep.subr.bf16.mxu0 0
  %195 = vmatpush1.bf16.msra.mxu0 0
  %196 = vmatprep.subr.bf16.mxu0 0
  %197 = vmatpush1.bf16.msra.mxu0 0
  %198 = vmatprep.subr.bf16.mxu0 0
  %199 = vmatpush1.bf16.msra.mxu0 0
  %200 = vmatprep.subr.bf16.mxu0 0
  %201 = vmatpush1.bf16.msra.mxu0 0
  %202 = vmatprep.subr.bf16.mxu0 0
  %203 = vmatpush1.bf16.msra.mxu0 0
  %204 = vmatprep.subr.bf16.mxu0 0
  %205 = vmatpush1.bf16.msra.mxu0 0
  %206 = vmatprep.mubr.bf16.mxu0 0
  %207 = vmatmul.mubr.bf16.gmra.mrb[0].mxu0 %v163
  %v208 = vpop.f32.mrb[0].mxu0
  %v209 = vadd.f32 %v147, %v208
  %v210 = vpop.f32.mrb[0].mxu0
  %v211 = vpop.f32.mrb[0].mxu0
  %v212 = vadd.f32 %v147, %v211
  %v213 = vpop.f32.mrb[0].mxu0
  %214 = vmatprep.mubr.bf16.mxu0 0
  %215 = vmatmul.mubr.bf16.gmra.mrb[0].mxu0 %v166
  %v216 = vpop.f32.mrb[0].mxu0
  %v217 = vadd.f32 %v147, %v216
  %v218 = vpop.f32.mrb[0].mxu0
  %v219 = vpop.f32.mrb[0].mxu0
  %v220 = vadd.f32 %v147, %v219
  %v221 = vpop.f32.mrb[0].mxu0
  %222 = vmatprep.mubr.bf16.mxu0 0
  %223 = vmatmul.mubr.bf16.gmra.mrb[0].mxu0 %v169
  %v224 = vpop.f32.mrb[0].mxu0
  %v225 = vadd.f32 %v147, %v224
  %v226 = vpop.f32.mrb[0].mxu0
  %v227 = vpop.f32.mrb[0].mxu0
  %v228 = vadd.f32 %v147, %v227
  %v229 = vpop.f32.mrb[0].mxu0
  %230 = vmatprep.mubr.bf16.mxu0 0
  %231 = vmatmul.mubr.bf16.gmra.mrb[0].mxu0 %v172
  %v232 = vpop.f32.mrb[0].mxu0
  %v233 = vadd.f32 %v147, %v232
  %v234 = vpop.f32.mrb[0].mxu0
  %v235 = vpop.f32.mrb[0].mxu0
  %v236 = vadd.f32 %v147, %v235
  %v237 = vpop.f32.mrb[0].mxu0
  %238 = vdwg.mxu0
  %vm239 = vcmask 64512
  %v240 = vsel %vm239, %v209, -inf
  %241 = vmax.xlane.f32.xlu0 %v240
  %v242 = vpop.xlane.xlu0 %241
  %v243 = vsel %vm239, %v212, -inf
  %244 = vmax.xlane.f32.xlu0 %v243
  %v245 = vpop.xlane.xlu0 %244
  %v246 = vsel %vm239, %v217, -inf
  %247 = vmax.xlane.f32.xlu0 %v246
  %v248 = vpop.xlane.xlu0 %247
  %v249 = vsel %vm239, %v220, -inf
  %250 = vmax.xlane.f32.xlu0 %v249
  %v251 = vpop.xlane.xlu0 %250
  %v252 = vsel %vm239, %v225, -inf
  %253 = vmax.xlane.f32.xlu0 %v252
  %v254 = vpop.xlane.xlu0 %253
  %v255 = vsel %vm239, %v228, -inf
  %256 = vmax.xlane.f32.xlu0 %v255
  %v257 = vpop.xlane.xlu0 %256
  %v258 = vsel %vm239, %v233, -inf
  %259 = vmax.xlane.f32.xlu0 %v258
  %v260 = vpop.xlane.xlu0 %259
  %v261 = vsel %vm239, %v236, -inf
  %262 = vmax.xlane.f32.xlu0 %v261
  %v263 = vpop.xlane.xlu0 %262
  %v264 = vsub.f32 %v209, %v242
  %v265 = vsub.f32 %v212, %v245
  %v266 = vsub.f32 %v217, %v248
  %v267 = vsub.f32 %v220, %v251
  %v268 = vsub.f32 %v225, %v254
  %v269 = vsub.f32 %v228, %v257
  %v270 = vsub.f32 %v233, %v260
  %v271 = vsub.f32 %v236, %v263
  %v272 = vmul.f32 %v264, 1.442695
  %v273 = vpow.pop %v272
  %v274 = vmul.f32 %v265, 1.442695
  %v275 = vpow.pop %v274
  %v276 = vmul.f32 %v266, 1.442695
  %v277 = vpow.pop %v276
  %v278 = vmul.f32 %v267, 1.442695
  %v279 = vpow.pop %v278
  %v280 = vmul.f32 %v268, 1.442695
  %v281 = vpow.pop %v280
  %v282 = vmul.f32 %v269, 1.442695
  %v283 = vpow.pop %v282
  %v284 = vmul.f32 %v270, 1.442695
  %v285 = vpow.pop %v284
  %v286 = vmul.f32 %v271, 1.442695
  %v287 = vpow.pop %v286
  %v288 = vsel %vm239, %v273, 0.0
  %289 = vadd.xlane.f32.xlu0 %v288
  %v290 = vpop.xlane.xlu0 %289
  %v291 = vsel %vm239, %v275, 0.0
  %292 = vadd.xlane.f32.xlu0 %v291
  %v293 = vpop.xlane.xlu0 %292
  %v294 = vsel %vm239, %v277, 0.0
  %295 = vadd.xlane.f32.xlu0 %v294
  %v296 = vpop.xlane.xlu0 %295
  %v297 = vsel %vm239, %v279, 0.0
  %298 = vadd.xlane.f32.xlu0 %v297
  %v299 = vpop.xlane.xlu0 %298
  %v300 = vsel %vm239, %v281, 0.0
  %301 = vadd.xlane.f32.xlu0 %v300
  %v302 = vpop.xlane.xlu0 %301
  %v303 = vsel %vm239, %v283, 0.0
  %304 = vadd.xlane.f32.xlu0 %v303
  %v305 = vpop.xlane.xlu0 %304
  %v306 = vsel %vm239, %v285, 0.0
  %307 = vadd.xlane.f32.xlu0 %v306
  %v308 = vpop.xlane.xlu0 %307
  %v309 = vsel %vm239, %v287, 0.0
  %310 = vadd.xlane.f32.xlu0 %v309
  %v311 = vpop.xlane.xlu0 %310
  %v312 = vrcp.pop %v290
  %v313 = vrcp.pop %v293
  %v314 = vrcp.pop %v296
  %v315 = vrcp.pop %v299
  %v316 = vrcp.pop %v302
  %v317 = vrcp.pop %v305
  %v318 = vrcp.pop %v308
  %v319 = vrcp.pop %v311
  %v320 = vmul.f32 %v273, %v312
  %v321 = vmul.f32 %v275, %v313
  %v322 = vmul.f32 %v277, %v314
  %v323 = vmul.f32 %v279, %v315
  %v324 = vmul.f32 %v281, %v316
  %v325 = vmul.f32 %v283, %v317
  %v326 = vmul.f32 %v285, %v318
  %v327 = vmul.f32 %v287, %v319
  %328 = vst.msk [vmem:[%s5] sm:$0xff] %vm239, %v320
  %329 = vst.msk [vmem:[%s5 + $0x8] sm:$0xff] %vm239, %v321
  %330 = vst.msk [vmem:[%s5 + $0x10] sm:$0xff] %vm239, %v322
  %331 = vst.msk [vmem:[%s5 + $0x18] sm:$0xff] %vm239, %v323
  %332 = vst.msk [vmem:[%s5 + $0x20] sm:$0xff] %vm239, %v324
  %333 = vst.msk [vmem:[%s5 + $0x28] sm:$0xff] %vm239, %v325
  %334 = vst.msk [vmem:[%s5 + $0x30] sm:$0xff] %vm239, %v326
  %335 = vst.msk [vmem:[%s5 + $0x38] sm:$0xff] %vm239, %v327
  // Predicated region
  $region22: #{_forward_pallas.1} parent=0 // pred_check
    _
  $region23: #{_forward_pallas.1} parent=0 // pred_check_branch
    %337 = sbr.rel (0) target = $region25
  $region24: #{_forward_pallas.1} parent=0 // pred_region
    _
  $region25: #{_forward_pallas.1} parent=0 // pred_fallthru
    _
  // Predicated region
  $region26: #{_forward_pallas.1} parent=0 // pred_check
    _
  $region27: #{_forward_pallas.1} parent=0 // pred_check_branch
    %339 = sbr.rel (0) target = $region29
  $region28: #{_forward_pallas.1} parent=0 // pred_region
    _
  $region29: #{_forward_pallas.1} parent=0 // pred_fallthru
    _

</llo_original>
